<compile_context>
chip_gen: v7x
topology: tpu7x:2x2x1
jax: 0.10.0
libtpu: 0.0.40
codegen_flags: <defaults>
</compile_context>

<pallas_src>
import jax
import jax.numpy as jnp
from jax.experimental import pallas as pl
from jax.experimental.pallas import tpu as pltpu


def _round_up(x, m):
    return ((x + m - 1) // m) * m


def _embed_gather_kernel(idx_ref, e_hbm, o_ref, sem):
    """One token-tile grid step.

    idx_ref: (n_tok_pad,) int32 flat token ids in SMEM (scalar prefetch).
    e_hbm:   (k, d_pad) embedding table, left in HBM (memory_space=ANY).
    o_ref:   (T, d_pad) output tile in VMEM; rows are filled directly by DMA.
    sem:     (1,) DMA semaphore shared by all row copies of this tile.
    """
    t = pl.program_id(0)
    tile_t, _ = o_ref.shape
    base = t * tile_t

    # Issue all T row gathers (multiple outstanding DMAs).
    @pl.loop(0, tile_t)
    def _issue(i):
        row = idx_ref[base + i]
        pltpu.make_async_copy(
            e_hbm.at[pl.ds(row, 1), :],
            o_ref.at[pl.ds(i, 1), :],
            sem.at[0],
        ).start()

    # Drain: every copy has the same transfer size, so waiting once per
    # issued copy on the shared semaphore guarantees all rows have landed
    # before the pipeline writes this tile back to HBM.
    @pl.loop(0, tile_t)
    def _drain(i):
        pltpu.make_async_copy(
            e_hbm.at[pl.ds(0, 1), :],
            o_ref.at[pl.ds(i, 1), :],
            sem.at[0],
        ).wait()


def embedding_lookup(E, idx):
    """Gather E[idx, :] with a Pallas TPU kernel.

    E:   (k, d_model) float embedding table.
    idx: integer indices of any shape; negative indices wrap (PyTorch-style).
    returns idx.shape + (d_model,) with E's dtype.
    """
    k, d_model = E.shape
    orig_shape = idx.shape
    flat_idx = idx.reshape(-1).astype(jnp.int32)
    n_tokens = flat_idx.shape[0]

    # PyTorch tensor-indexing semantics: negative indices wrap around.
    flat_idx = jnp.where(flat_idx < 0, flat_idx + k, flat_idx)
    # Clamp so a malformed index can never drive an out-of-bounds HBM DMA.
    flat_idx = jnp.clip(flat_idx, 0, k - 1)

    # ---- feature padding: only when d_model is not lane-aligned -----------
    if d_model % 128 == 0:
        d_pad, E_p = d_model, E
    else:
        d_pad = _round_up(d_model, 128)
        E_p = jnp.zeros((k, d_pad), E.dtype).at[:, :d_model].set(E)

    # ---- token tiling ------------------------------------------------------
    # T rows of the output tile are double-buffered by the pipeline; keep the
    # tile comfortably small (gather traffic does NOT depend on T, unlike the
    # old one-hot design, so there is no pressure to make it huge).
    tok_tile = max(8, min(256, _round_up(n_tokens, 8)))
    n_tok_pad = _round_up(n_tokens, tok_tile)
    idx_p = jnp.zeros((n_tok_pad,), jnp.int32).at[:n_tokens].set(flat_idx)

    grid = (n_tok_pad // tok_tile,)

    itemsize = jnp.dtype(E_p.dtype).itemsize
    out_tile_bytes = tok_tile * d_pad * itemsize
    # 2x double-buffered output tile + generous margin, capped for v7x's
    # 64 MiB per-TC VMEM.
    vmem_bytes = int(min(48 * 1024 * 1024, max(8 * 1024 * 1024, 4 * out_tile_bytes)))

    out = pl.pallas_call(
        _embed_gather_kernel,
        out_shape=jax.ShapeDtypeStruct((n_tok_pad, d_pad), E_p.dtype),
        grid_spec=pltpu.PrefetchScalarGridSpec(
            num_scalar_prefetch=1,
            grid=grid,
            in_specs=[
                # Embedding table stays in HBM; rows are gathered manually.
                pl.BlockSpec(memory_space=pl.ANY),
            ],
            out_specs=pl.BlockSpec((tok_tile, d_pad), lambda t, idx_ref: (t, 0)),
            scratch_shapes=[pltpu.SemaphoreType.DMA((1,))],
        ),
        compiler_params=pltpu.CompilerParams(
            dimension_semantics=("parallel",),
            vmem_limit_bytes=vmem_bytes,
        ),
    )(idx_p, E_p)

    out = out[:n_tokens, :d_model]
    return out.reshape(*orig_shape, d_model)


if __name__ == "__main__":
    key = jax.random.PRNGKey(0)
    k_e, k_i = jax.random.split(key)

    # Small shapes consistent with the module's forward.
    k_vocab, d_model = 16, 128
    batch, seq = 2, 8

    # Deterministic init mirroring torch.randn(k, d_model) * 0.05
    E = jax.random.normal(k_e, (k_vocab, d_model), dtype=jnp.float32) * 0.05
    idx = jax.random.randint(k_i, (batch, seq), 0, k_vocab, dtype=jnp.int32)

    out = embedding_lookup(E, idx)
    out = jax.block_until_ready(out)

    ref = jnp.take(E, idx, axis=0)
    assert out.shape == (batch, seq, d_model)
    assert jnp.allclose(out, ref), "mismatch vs reference gather"

    # Negative indices wrap (PyTorch tensor-indexing semantics).
    idx_neg = idx - k_vocab
    out_neg = jax.block_until_ready(embedding_lookup(E, idx_neg))
    assert jnp.allclose(out_neg, ref), "mismatch (negative-index wrap)"

    # Unaligned vocab / d_model exercise the feature-padding path.
    k2, d2 = 10, 96
    E2 = jax.random.normal(k_e, (k2, d2), dtype=jnp.float32) * 0.05
    idx2 = jax.random.randint(k_i, (3, 5), 0, k2, dtype=jnp.int32)
    out2 = jax.block_until_ready(embedding_lookup(E2, idx2))
    assert jnp.allclose(out2, jnp.take(E2, idx2, axis=0)), "mismatch (padded path)"

    print("KERNEL_OK")
</pallas_src>

<mosaic_0001>
module attributes {stable_mosaic.version = 11 : i64} {
  func.func @_embed_gather_kernel(%arg0: i32, %arg1: memref<16xi32, #tpu.memory_space<smem>>, %arg2: memref<16x128xf32, #tpu.memory_space<any>>, %arg3: memref<16x128xf32, #tpu.memory_space<vmem>>, %arg4: memref<1x!tpu.dma_semaphore, #tpu.memory_space<semaphore_mem>>) attributes {dimension_semantics = [#tpu.dimension_semantics<parallel>], iteration_bounds = array<i64: 1>, scalar_prefetch = 1 : i64, scratch_operands = 1 : i64, tpu.core_type = #tpu.core_type<tc>, window_params = [{}, {transform_indices = @transform_1, window_bounds = array<i64: 16, 128>}]} {
    %c16_i32 = arith.constant 16 : i32
    %0 = arith.muli %arg0, %c16_i32 : i32
    %c0_i32 = arith.constant 0 : i32
    %c16_i32_0 = arith.constant 16 : i32
    %1 = arith.addi %c0_i32, %c16_i32_0 : i32
    %c1_i32 = arith.constant 1 : i32
    scf.for %arg5 = %c0_i32 to %1 step %c1_i32  : i32 {
      %c1_i32_6 = arith.constant 1 : i32
      %3 = arith.muli %arg5, %c1_i32_6 : i32
      %c0_i32_7 = arith.constant 0 : i32
      %4 = arith.addi %c0_i32_7, %3 : i32
      %5 = arith.addi %0, %4 : i32
      %6 = arith.index_cast %5 : i32 to index
      %7 = memref.load %arg1[%6] : memref<16xi32, #tpu.memory_space<smem>>
      %c0_i32_8 = arith.constant 0 : i32
      %c0_i32_9 = arith.constant 0 : i32
      %8 = tpu.memref_slice %arg2[%7, %c0_i32_9] : memref<16x128xf32, #tpu.memory_space<any>> -> memref<1x128xf32, #tpu.memory_space<any>>
      %c0_i32_10 = arith.constant 0 : i32
      %9 = tpu.memref_slice %arg3[%4, %c0_i32_10] : memref<16x128xf32, #tpu.memory_space<vmem>> -> memref<1x128xf32, #tpu.memory_space<vmem>>
      %10 = tpu.memref_slice %arg4[%c0_i32_8] : memref<1x!tpu.dma_semaphore, #tpu.memory_space<semaphore_mem>> -> memref<1x!tpu.dma_semaphore, #tpu.memory_space<semaphore_mem>>
      %11 = tpu.memref_squeeze %10 : memref<1x!tpu.dma_semaphore, #tpu.memory_space<semaphore_mem>> -> memref<!tpu.dma_semaphore, #tpu.memory_space<semaphore_mem>>
      tpu.enqueue_dma source(%8 : memref<1x128xf32, #tpu.memory_space<any>>) target(%9 : memref<1x128xf32, #tpu.memory_space<vmem>>) target_semaphore(%11 : memref<!tpu.dma_semaphore, #tpu.memory_space<semaphore_mem>>)
    }
    %c16_i32_1 = arith.constant 16 : i32
    %c0_i32_2 = arith.constant 0 : i32
    %c16_i32_3 = arith.constant 16 : i32
    %2 = arith.addi %c0_i32_2, %c16_i32_3 : i32
    %c1_i32_4 = arith.constant 1 : i32
    scf.for %arg5 = %c0_i32_2 to %2 step %c1_i32_4  : i32 {
      %c1_i32_6 = arith.constant 1 : i32
      %3 = arith.muli %arg5, %c1_i32_6 : i32
      %c0_i32_7 = arith.constant 0 : i32
      %4 = arith.addi %c0_i32_7, %3 : i32
      %c0_i32_8 = arith.constant 0 : i32
      %c0_i32_9 = arith.constant 0 : i32
      %c0_i32_10 = arith.constant 0 : i32
      %5 = tpu.memref_slice %arg2[%c0_i32_9, %c0_i32_10] : memref<16x128xf32, #tpu.memory_space<any>> -> memref<1x128xf32, #tpu.memory_space<any>>
      %c0_i32_11 = arith.constant 0 : i32
      %6 = tpu.memref_slice %arg3[%4, %c0_i32_11] : memref<16x128xf32, #tpu.memory_space<vmem>> -> memref<1x128xf32, #tpu.memory_space<vmem>>
      %7 = tpu.memref_slice %arg4[%c0_i32_8] : memref<1x!tpu.dma_semaphore, #tpu.memory_space<semaphore_mem>> -> memref<1x!tpu.dma_semaphore, #tpu.memory_space<semaphore_mem>>
      %8 = tpu.memref_squeeze %7 : memref<1x!tpu.dma_semaphore, #tpu.memory_space<semaphore_mem>> -> memref<!tpu.dma_semaphore, #tpu.memory_space<semaphore_mem>>
      tpu.wait_dma2 semaphore(%8 : memref<!tpu.dma_semaphore, #tpu.memory_space<semaphore_mem>>) src(%5 : memref<1x128xf32, #tpu.memory_space<any>>) dst(%6 : memref<1x128xf32, #tpu.memory_space<vmem>>)
    }
    %c16_i32_5 = arith.constant 16 : i32
    return
  }
  func.func @transform_1(%arg0: i32, %arg1: memref<16xi32, #tpu.memory_space<smem>>) -> (i32, i32) {
    %c0_i32 = arith.constant 0 : i32
    %c0_i32_0 = arith.constant 0 : i32
    return %arg0, %c0_i32 : i32, i32
  }
}

</mosaic_0001>

<llo_original>
// kernel: tpu_custom_call.1
$region0: #{tpu_custom_call.1}
  #allocation0 [shape = 'u32[]', space=smem, size = 0x4, offset = 0x4, fixed_abs, tag = 'smem constant byte address 0x4 - core index']
  #allocation1 [shape = 'u32[144,128]{1,0:T(1,128)}', space=vmem, size = 0x12000, scoped, tag = 'internal scratch']
  #allocation2 [shape = 's32[1]{0}', space=sflag, size = 0x4, scoped, tag = 'scratch operand']
  #allocation3 [shape = 's32[1]{0}', space=sflag, size = 0x4, scoped, tag = 'scoped memory for tpu_custom_call.1']
  #allocation4 [shape = 'u8[512]{0}', space=smem, size = 0x200, scoped, tag = 'prefetched SMEM operand 0']
  #allocation7 [shape = 's32[]', space=sflag, size = 0x4, offset = 0, fixed_abs, tag = 'sflag constant byte address 0x0 - dummy sync flag']
  #allocation8 [shape = 's32[]', space=sflag, size = 0x4, offset = 0, fixed_abs, tag = 'sflag constant byte address 0x0 - dummy sync flag']
  #allocation9 [shape = 'u32[]', space=smem, size = 0x4, offset = 0x44, fixed_abs, tag = 'smem constant byte address 0x44 - assertion arg 0']
  #allocation10 [shape = 'u32[]', space=smem, size = 0x4, offset = 0x48, fixed_abs, tag = 'smem constant byte address 0x48 - assertion arg 1']
  %s0 = inlined_call_operand.hbm [shape: s32[16], index: 0, kind: input, shape index: {}]
  %s1 = inlined_call_operand.hbm [shape: f32[16,128], index: 1, kind: input, shape index: {}]
  %s2 = inlined_call_operand.hbm [shape: f32[16,128], index: 2, kind: output, shape index: {}]
  %s3 = sld [smem:[#allocation0]]
  $region28: #{tpu_custom_call.1} parent=0
    _
  %s5 = ssub.s32 1, %s3
  %s6 = scalar_select 0, %s5, %s3
  %8 = dma.hbm_to_smem %s0, 16, [#allocation4], [#allocation3]
  %9 = dma.done [#allocation3], 16
  %10 = sfence
  $region1: #{tpu_custom_call.1} parent=0
    #allocation5 [shape = 'u8[8192]{0}', space=vmem, size = 0x2000, scoped, tag = 'output window, operand 0, single buffered']
    #allocation6 [shape = 's32[1]{0}', space=sflag, size = 0x4, scoped, tag = 'scoped memory for tpu_custom_call.1']
    %11 = vsyncpa [#allocation6], 0
    %s12 = smul.u32 0, 16
    loop: start=0, step=1, limit=16
    $region2: #{tpu_custom_call.1} parent=1 // loop_pre_header
      _
    $region3: #{tpu_custom_call.1} parent=1 // loop_header
      %s14 = sphi 0, %s18
      %p15 = scmp.ge.s32.totalorder %s14, 16
    $region4: #{tpu_custom_call.1} parent=1 // loop_header_branch
      %17 = sbr.rel (%p15) target = $region8
    $region5: #{tpu_custom_call.1} parent=1 // loop_body
      %s19 = sadd.s32 %s12, %s14
      %s20 = sld [smem:[#allocation4 + %s19]]
      %s21 = smul.addr %s20, 16
      %s22 = scalar_lea.hbm %s1, %s21
      %s23 = scalar_lea.vmem [#allocation5], %s14
      // Predicated region
      $region9: #{tpu_custom_call.1} parent=5 // pred_check
        _
      $region10: #{tpu_custom_call.1} parent=5 // pred_check_branch
        %25 = sbr.rel target = $region12
      $region11: #{tpu_custom_call.1} parent=5 // pred_region
        %26 = sst [smem:[#allocation9]] [#allocation8]
        %27 = sst [smem:[#allocation10]] [#allocation7]
      $region12: #{tpu_custom_call.1} parent=5 // pred_fallthru
        _
      %29 = shalt.err (0)
      %s31 = sshll.u32 %s23, 4
      %s32 = int_to_ptr.vmem [resolvable:$true] %s31
      %34 = dma.hbm_to_vmem [thread:$0]  %s22, 16, %s32, [#allocation2]
    $region6: #{tpu_custom_call.1} parent=1 // loop_footer
      %s18 = sadd.s32 1, %s14
    $region7: #{tpu_custom_call.1} parent=1 // loop_footer_branch
      %13 = sbr.rel target = $region3
    $region8: #{tpu_custom_call.1} parent=1 // loop_exit
      _
    loop: start=0, step=1, limit=16
    $region13: #{tpu_custom_call.1} parent=1 // loop_pre_header
      _
    $region14: #{tpu_custom_call.1} parent=1 // loop_header
      %s36 = sphi 0, %s40
      %p37 = scmp.ge.s32.totalorder %s36, 16
    $region15: #{tpu_custom_call.1} parent=1 // loop_header_branch
      %39 = sbr.rel (%p37) target = $region19
    $region16: #{tpu_custom_call.1} parent=1 // loop_body
      %s41 = smul.u32 1, 1
      %s42 = sshll.u32 %s41, 4
      %43 = dma.done [#allocation2], %s42
    $region17: #{tpu_custom_call.1} parent=1 // loop_footer
      %s40 = sadd.s32 1, %s36
    $region18: #{tpu_custom_call.1} parent=1 // loop_footer_branch
      %35 = sbr.rel target = $region14
    $region19: #{tpu_custom_call.1} parent=1 // loop_exit
      _
    // Predicated region
    $region20: #{tpu_custom_call.1} parent=1 // pred_check
      _
    $region21: #{tpu_custom_call.1} parent=1 // pred_check_branch
      %45 = sbr.rel (0) target = $region23
    $region22: #{tpu_custom_call.1} parent=1 // pred_region
      %s47 = ssub.s32 256, 256
      %48 = vsyncadd [#allocation6], %s47
      %s49 = sshll.u32 [#allocation5], 4
      %s50 = int_to_ptr.vmem [resolvable:$true] %s49
      %55 = dma.vmem_to_hbm [thread:$0]  %s50, 256, %s2, [#allocation6], 128, 128, 8
    $region23: #{tpu_custom_call.1} parent=1 // pred_fallthru
      _
    // Predicated region
    $region24: #{tpu_custom_call.1} parent=1 // pred_check
      _
    $region25: #{tpu_custom_call.1} parent=1 // pred_check_branch
      %57 = sbr.rel (0) target = $region27
    $region26: #{tpu_custom_call.1} parent=1 // pred_region
      %58 = dma.done [#allocation6], 256
    $region27: #{tpu_custom_call.1} parent=1 // pred_fallthru
      _
    %59 = vsyncpa [#allocation6], 1
  %60 = vsyncmov [#allocation2]
  %s61 = vpop.sfrf %60
  %p62 = scmp.eq.s32.totalorder %s61, 0
  %p63 = pneg %p62
  %65 = shalt.err (%p63)

</llo_original>
